<compile_context>
chip_gen: v7x
topology: tpu7x:2x2x1
jax: 0.10.0
libtpu: 0.0.40
codegen_flags: <defaults>
</compile_context>

<pallas_src>
import functools

import jax
import jax.numpy as jnp
from jax.experimental import pallas as pl
from jax.experimental.pallas import tpu as pltpu


def _round_up(x, m):
    return ((x + m - 1) // m) * m


def _sublane_align(dtype):
    # second-to-last block dim alignment per dtype packing
    return {4: 8, 2: 16, 1: 32}.get(jnp.dtype(dtype).itemsize, 8)


def _pick_tile(dim, t_max, align, max_waste=0.125):
    """Pick a tile <= t_max (multiple of `align`) bounding padding waste."""
    dim_aligned = _round_up(dim, align)
    t = max(align, min(t_max, dim_aligned))
    best_t, best_waste = t, 1.0
    while True:
        pad = _round_up(dim, t)
        waste = (pad - dim) / pad
        if waste <= max_waste:
            return t
        if waste < best_waste:
            best_t, best_waste = t, waste
        if t <= align:
            return best_t
        t = max(align, _round_up(t // 2, align))


def _vmem_footprint(tm, tn, tk, in_itemsize, out_itemsize):
    # double-buffered x, w, bias tiles + double-buffered out tile + f32 acc
    return (2 * (tm * tk + tk * tn + tn) * in_itemsize
            + 2 * tm * tn * out_itemsize
            + tm * tn * 4)


def _linear_kernel(x_ref, w_ref, b_ref, o_ref, acc_ref):
    # x_ref:   (tm, tk)  activation tile
    # w_ref:   (tk, tn)  weight tile, already (in, out) so the MXU eats it raw
    # b_ref:   (1,  tn)  bias tile
    # o_ref:   (tm, tn)  output tile
    # acc_ref: (tm, tn)  f32 accumulator, resident across the K grid axis
    k = pl.program_id(2)

    @pl.when(k == 0)
    def _():
        # Seed the accumulator with the broadcast bias -> no add in the epilogue.
        acc_ref[...] = jnp.broadcast_to(
            b_ref[...].astype(jnp.float32), acc_ref.shape)

    acc_ref[...] += jnp.dot(
        x_ref[...], w_ref[...], preferred_element_type=jnp.float32)

    @pl.when(k == pl.num_programs(2) - 1)
    def _():
        o_ref[...] = acc_ref[...].astype(o_ref.dtype)


def linear_pallas(x, weight, bias, *, tm=512, tn=512, tk=2048,
                  compute_dtype=None):
    """y = x @ weight.T + bias  (matches torch.nn.Linear forward).

    x:      (..., input_size)
    weight: (output_size, input_size)
    bias:   (output_size,)
    compute_dtype: optional dtype (e.g. jnp.bfloat16) to cast x/weight to for
                   the matmul; accumulation stays f32 and the output keeps
                   x.dtype.  Default None preserves the module's numerics.
    """
    out_dtype = x.dtype
    n, k = weight.shape
    lead_shape = x.shape[:-1]
    m = 1
    for d in lead_shape:
        m *= d

    x2d = x.reshape(m, k)
    w2d = weight.T                      # (K, N): MXU-native RHS layout
    b2d = bias.reshape(1, n)

    if compute_dtype is not None:
        x2d = x2d.astype(compute_dtype)
        w2d = w2d.astype(compute_dtype)

    in_itemsize = jnp.dtype(x2d.dtype).itemsize
    out_itemsize = jnp.dtype(out_dtype).itemsize
    sub = max(_sublane_align(x2d.dtype), _sublane_align(out_dtype))

    # --- tile selection (bounded padding waste, lane-dense N/K) ------------
    tm = _pick_tile(m, tm, sub)
    tn = _pick_tile(n, tn, 128)
    tk = _pick_tile(k, tk, 128)

    # --- keep the working set under ~44 MiB (v7x has 64 MiB VMEM per TC) ---
    vmem_budget = 44 * 1024 * 1024
    while _vmem_footprint(tm, tn, tk, in_itemsize, out_itemsize) > vmem_budget and tk > 512:
        tk = max(512, _round_up(tk // 2, 128))
    while _vmem_footprint(tm, tn, tk, in_itemsize, out_itemsize) > vmem_budget and tn > 256:
        tn = max(256, _round_up(tn // 2, 128))
    while _vmem_footprint(tm, tn, tk, in_itemsize, out_itemsize) > vmem_budget and tm > sub:
        tm = max(sub, _round_up(tm // 2, sub))

    m_pad = _round_up(m, tm)
    n_pad = _round_up(n, tn)
    k_pad = _round_up(k, tk)

    # --- pad only when necessary (zero pads are exact for matmul) ----------
    if (m_pad != m) or (k_pad != k):
        x2d = jnp.pad(x2d, ((0, m_pad - m), (0, k_pad - k)))
    if (k_pad != k) or (n_pad != n):
        w2d = jnp.pad(w2d, ((0, k_pad - k), (0, n_pad - n)))
    if n_pad != n:
        b2d = jnp.pad(b2d, ((0, 0), (0, n_pad - n)))

    m_blocks = m_pad // tm
    n_blocks = n_pad // tn
    k_blocks = k_pad // tk

    # --- grid ordering: larger parallel axis leads (v7x 2-TC sharding) -----
    n_leading = n_blocks > m_blocks
    if n_leading:
        grid = (n_blocks, m_blocks, k_blocks)
        x_map = lambda j, i, kk: (i, kk)
        w_map = lambda j, i, kk: (kk, j)
        b_map = lambda j, i, kk: (0, j)
        o_map = lambda j, i, kk: (i, j)
    else:
        grid = (m_blocks, n_blocks, k_blocks)
        x_map = lambda i, j, kk: (i, kk)
        w_map = lambda i, j, kk: (kk, j)
        b_map = lambda i, j, kk: (0, j)
        o_map = lambda i, j, kk: (i, j)

    # --- cost estimate reflecting real HBM streaming counts -----------------
    bytes_accessed = int(
        m_pad * k_pad * in_itemsize * n_blocks                      # x, per N-block
        + k_pad * n_pad * jnp.dtype(w2d.dtype).itemsize * m_blocks  # w, per M-block
        + n_pad * jnp.dtype(b2d.dtype).itemsize * m_blocks          # bias
        + m_pad * n_pad * out_itemsize                              # output
    )
    cost = pl.CostEstimate(
        flops=2 * m_pad * k_pad * n_pad,
        transcendentals=0,
        bytes_accessed=bytes_accessed,
    )

    vmem_needed = _vmem_footprint(tm, tn, tk, in_itemsize, out_itemsize)
    vmem_limit = min(48 * 1024 * 1024,
                     max(32 * 1024 * 1024, vmem_needed + (2 << 20)))

    out = pl.pallas_call(
        _linear_kernel,
        out_shape=jax.ShapeDtypeStruct((m_pad, n_pad), out_dtype),
        grid_spec=pltpu.PrefetchScalarGridSpec(
            num_scalar_prefetch=0,
            grid=grid,
            in_specs=[
                pl.BlockSpec((tm, tk), x_map),   # x
                pl.BlockSpec((tk, tn), w_map),   # weight (K, N)
                pl.BlockSpec((1, tn), b_map),    # bias
            ],
            out_specs=pl.BlockSpec((tm, tn), o_map),
            scratch_shapes=[pltpu.VMEM((tm, tn), jnp.float32)],
        ),
        compiler_params=pltpu.CompilerParams(
            dimension_semantics=("parallel", "parallel", "arbitrary"),
            vmem_limit_bytes=int(vmem_limit),
        ),
        cost_estimate=cost,
    )(x2d, w2d, b2d)

    out = out[:m, :n]
    return out.reshape(*lead_shape, n)


def init_linear_params(key, input_size, output_size, dtype=jnp.float32):
    """Deterministic init mimicking nn.Linear's kaiming-uniform / uniform bias."""
    kw, kb = jax.random.split(key)
    bound = 1.0 / (input_size ** 0.5)
    weight = jax.random.uniform(kw, (output_size, input_size), dtype,
                                minval=-bound, maxval=bound)
    bias = jax.random.uniform(kb, (output_size,), dtype,
                              minval=-bound, maxval=bound)
    return weight, bias


if __name__ == "__main__":
    key = jax.random.PRNGKey(0)
    k_x, k_p = jax.random.split(key)

    batch, seq, input_size, output_size = 2, 8, 32, 64

    x = jax.random.normal(k_x, (batch, seq, input_size), dtype=jnp.float32)
    weight, bias = init_linear_params(k_p, input_size, output_size)

    linear_jit = jax.jit(functools.partial(linear_pallas))
    y = linear_jit(x, weight, bias)
    y = jax.block_until_ready(y)

    # Reference check against plain JAX (same math as torch.nn.Linear).
    y_ref = x @ weight.T + bias
    assert y.shape == (batch, seq, output_size)
    assert jnp.allclose(y, y_ref, atol=1e-5, rtol=1e-5)

    print("KERNEL_OK")
</pallas_src>

<mosaic_0001>
module attributes {stable_mosaic.version = 11 : i64} {
  func.func @_linear_kernel(%arg0: i32, %arg1: i32, %arg2: i32, %arg3: memref<16x128xf32, #tpu.memory_space<vmem>>, %arg4: memref<128x128xf32, #tpu.memory_space<vmem>>, %arg5: memref<1x128xf32, #tpu.memory_space<vmem>>, %arg6: memref<16x128xf32, #tpu.memory_space<vmem>>, %arg7: memref<16x128xf32, #tpu.memory_space<vmem>>) attributes {dimension_semantics = [#tpu.dimension_semantics<parallel>, #tpu.dimension_semantics<parallel>, #tpu.dimension_semantics<arbitrary>], iteration_bounds = array<i64: 1, 1, 1>, scalar_prefetch = 0 : i64, scratch_operands = 1 : i64, tpu.core_type = #tpu.core_type<tc>, window_params = [{transform_indices = @transform_0, window_bounds = array<i64: 16, 128>}, {transform_indices = @transform_1, window_bounds = array<i64: 128, 128>}, {transform_indices = @transform_2, window_bounds = array<i64: 1, 128>}, {transform_indices = @transform_3, window_bounds = array<i64: 16, 128>}]} {
    %c0_i32 = arith.constant 0 : i32
    %0 = arith.cmpi eq, %arg2, %c0_i32 : i32
    %1 = arith.extui %0 : i1 to i32
    %c0_i32_0 = arith.constant 0 : i32
    %2 = arith.cmpi ne, %1, %c0_i32_0 : i32
    scf.if %2 {
      %c0_10 = arith.constant 0 : index
      %c0_11 = arith.constant 0 : index
      %12 = vector.load %arg5[%c0_10, %c0_11] : memref<1x128xf32, #tpu.memory_space<vmem>>, vector<1x128xf32>
      %13 = vector.shape_cast %12 : vector<1x128xf32> to vector<1x128xf32>
      %14 = vector.broadcast %13 : vector<1x128xf32> to vector<16x128xf32>
      %c0_12 = arith.constant 0 : index
      %c0_13 = arith.constant 0 : index
      %15 = vector.load %arg7[%c0_12, %c0_13] : memref<16x128xf32, #tpu.memory_space<vmem>>, vector<16x128xf32>
      tpu.vector_store %arg7[%c0_12, %c0_13], %14 {strides = array<i32>} : memref<16x128xf32, #tpu.memory_space<vmem>>, vector<16x128xf32>,
    } else {
    }
    %c0 = arith.constant 0 : index
    %c0_1 = arith.constant 0 : index
    %3 = vector.load %arg7[%c0, %c0_1] : memref<16x128xf32, #tpu.memory_space<vmem>>, vector<16x128xf32>
    %c0_2 = arith.constant 0 : index
    %c0_3 = arith.constant 0 : index
    %4 = vector.load %arg3[%c0_2, %c0_3] : memref<16x128xf32, #tpu.memory_space<vmem>>, vector<16x128xf32>
    %c0_4 = arith.constant 0 : index
    %c0_5 = arith.constant 0 : index
    %5 = vector.load %arg4[%c0_4, %c0_5] : memref<128x128xf32, #tpu.memory_space<vmem>>, vector<128x128xf32>
    %cst = arith.constant dense<0.000000e+00> : vector<16x128xf32>
    %6 = tpu.matmul %4, %5, %cst {dimension_numbers = #tpu.dot_dimension_numbers<[1], [0], [0], [1], [0, 0, 1, 1], [], []>} : vector<16x128xf32>, vector<128x128xf32>, vector<16x128xf32> -> vector<16x128xf32>
    %7 = arith.addf %3, %6 : vector<16x128xf32>
    %c0_6 = arith.constant 0 : index
    %c0_7 = arith.constant 0 : index
    %8 = vector.load %arg7[%c0_6, %c0_7] : memref<16x128xf32, #tpu.memory_space<vmem>>, vector<16x128xf32>
    tpu.vector_store %arg7[%c0_6, %c0_7], %7 {strides = array<i32>} : memref<16x128xf32, #tpu.memory_space<vmem>>, vector<16x128xf32>,
    %c0_i32_8 = arith.constant 0 : i32
    %9 = arith.cmpi eq, %arg2, %c0_i32_8 : i32
    %10 = arith.extui %9 : i1 to i32
    %c0_i32_9 = arith.constant 0 : i32
    %11 = arith.cmpi ne, %10, %c0_i32_9 : i32
    scf.if %11 {
      %c0_10 = arith.constant 0 : index
      %c0_11 = arith.constant 0 : index
      %12 = vector.load %arg7[%c0_10, %c0_11] : memref<16x128xf32, #tpu.memory_space<vmem>>, vector<16x128xf32>
      %c0_12 = arith.constant 0 : index
      %c0_13 = arith.constant 0 : index
      %13 = vector.load %arg6[%c0_12, %c0_13] : memref<16x128xf32, #tpu.memory_space<vmem>>, vector<16x128xf32>
      tpu.vector_store %arg6[%c0_12, %c0_13], %12 {strides = array<i32>} : memref<16x128xf32, #tpu.memory_space<vmem>>, vector<16x128xf32>,
    } else {
    }
    return
  }
  func.func @transform_0(%arg0: i32, %arg1: i32, %arg2: i32) -> (i32, i32) {
    %c0_i32 = arith.constant 0 : i32
    return %arg0, %arg2 : i32, i32
  }
  func.func @transform_1(%arg0: i32, %arg1: i32, %arg2: i32) -> (i32, i32) {
    %c0_i32 = arith.constant 0 : i32
    return %arg2, %arg1 : i32, i32
  }
  func.func @transform_2(%arg0: i32, %arg1: i32, %arg2: i32) -> (i32, i32) {
    %c0_i32 = arith.constant 0 : i32
    %c0_i32_0 = arith.constant 0 : i32
    return %c0_i32, %arg1 : i32, i32
  }
  func.func @transform_3(%arg0: i32, %arg1: i32, %arg2: i32) -> (i32, i32) {
    %c0_i32 = arith.constant 0 : i32
    return %arg0, %arg1 : i32, i32
  }
}

</mosaic_0001>

<llo_original>
// kernel: linear_pallas.1
$region0: #{linear_pallas.1}
  #allocation0 [shape = 'u32[]', space=smem, size = 0x4, offset = 0x4, fixed_abs, tag = 'smem constant byte address 0x4 - core index']
  #allocation1 [shape = 'u32[144,128]{1,0:T(1,128)}', space=vmem, size = 0x12000, scoped, tag = 'internal scratch']
  #allocation2 [shape = 'f32[16,128]{1,0:T(8,128)}', space=vmem, size = 0x2000, scoped, tag = 'scratch operand']
  %s0 = inlined_call_operand.vmem [shape: f32[16,128], index: 0, kind: input, shape index: {}]
  %s1 = inlined_call_operand.vmem [shape: f32[128,128], index: 1, kind: input, shape index: {}]
  %s2 = inlined_call_operand.vmem [shape: f32[1,128], index: 2, kind: input, shape index: {}]
  %s3 = inlined_call_operand.vmem [shape: f32[16,128], index: 3, kind: output, shape index: {}]
  %s4 = sld [smem:[#allocation0]]
  $region30: #{linear_pallas.1} parent=0
    _
  %s6 = ssub.s32 1, %s4
  %s7 = scalar_select 0, %s6, %s4
  // Predicated region
  $region2: #{linear_pallas.1} parent=0 // pred_check
    _
  $region3: #{linear_pallas.1} parent=0 // pred_check_branch
    %9 = sbr.rel (0) target = $region5
  $region4: #{linear_pallas.1} parent=0 // pred_region
    _
  $region5: #{linear_pallas.1} parent=0 // pred_fallthru
    _
  // Predicated region
  $region6: #{linear_pallas.1} parent=0 // pred_check
    _
  $region7: #{linear_pallas.1} parent=0 // pred_check_branch
    %11 = sbr.rel (0) target = $region9
  $region8: #{linear_pallas.1} parent=0 // pred_region
    _
  $region9: #{linear_pallas.1} parent=0 // pred_fallthru
    _
  // Predicated region
  $region10: #{linear_pallas.1} parent=0 // pred_check
    _
  $region11: #{linear_pallas.1} parent=0 // pred_check_branch
    %13 = sbr.rel (0) target = $region13
  $region12: #{linear_pallas.1} parent=0 // pred_region
    _
  $region13: #{linear_pallas.1} parent=0 // pred_fallthru
    _
  %p14 = scmp.eq.s32.totalorder 0, 0
  // Predicated region
  $region14: #{linear_pallas.1} parent=0 // pred_check
    %p15 = pneg %p14
  $region15: #{linear_pallas.1} parent=0 // pred_check_branch
    %17 = sbr.rel (%p15) target = $region17
  $region16: #{linear_pallas.1} parent=0 // pred_region
    %v18 = vld [vmem:[%s2] sm:$0x1]
    %v20 = vlaneseq
    %v21 = vshrl.u32 %v20, 7
    %v22 = vsub.s32 0, %v21
    %v23 = vrot.slane %v18, %v22
    %25 = vst [vmem:[#allocation2] sm:$0xff] %v23
    %26 = vst [vmem:[#allocation2 + $0x8] sm:$0xff] %v23
  $region17: #{linear_pallas.1} parent=0 // pred_fallthru
    _
  %v27 = vld [vmem:[#allocation2] sm:$0xff]
  %v28 = vld [vmem:[#allocation2 + $0x8] sm:$0xff]
  %v29 = vld [vmem:[%s0] sm:$0xff]
  %v30 = vld [vmem:[%s0 + $0x8] sm:$0xff]
  %v31 = vld [vmem:[%s1] sm:$0xff]
  %v32 = vld [vmem:[%s1 + $0x8] sm:$0xff]
  %v33 = vld [vmem:[%s1 + $0x10] sm:$0xff]
  %v34 = vld [vmem:[%s1 + $0x18] sm:$0xff]
  %v35 = vld [vmem:[%s1 + $0x20] sm:$0xff]
  %v36 = vld [vmem:[%s1 + $0x28] sm:$0xff]
  %v37 = vld [vmem:[%s1 + $0x30] sm:$0xff]
  %v38 = vld [vmem:[%s1 + $0x38] sm:$0xff]
  %v39 = vld [vmem:[%s1 + $0x40] sm:$0xff]
  %v40 = vld [vmem:[%s1 + $0x48] sm:$0xff]
  %v41 = vld [vmem:[%s1 + $0x50] sm:$0xff]
  %v42 = vld [vmem:[%s1 + $0x58] sm:$0xff]
  %v43 = vld [vmem:[%s1 + $0x60] sm:$0xff]
  %v44 = vld [vmem:[%s1 + $0x68] sm:$0xff]
  %v45 = vld [vmem:[%s1 + $0x70] sm:$0xff]
  %v46 = vld [vmem:[%s1 + $0x78] sm:$0xff]
  %47 = vmatprep.subr.mxu0 0.0
  %48 = vmatpush1.msra.mxu0 %v31
  %49 = vmatprep.subr.mxu0 0.0
  %50 = vmatpush1.msra.mxu0 %v32
  %51 = vmatprep.subr.mxu0 0.0
  %52 = vmatpush1.msra.mxu0 %v33
  %53 = vmatprep.subr.mxu0 0.0
  %54 = vmatpush1.msra.mxu0 %v34
  %55 = vmatprep.subr.mxu0 0.0
  %56 = vmatpush1.msra.mxu0 %v35
  %57 = vmatprep.subr.mxu0 0.0
  %58 = vmatpush1.msra.mxu0 %v36
  %59 = vmatprep.subr.mxu0 0.0
  %60 = vmatpush1.msra.mxu0 %v37
  %61 = vmatprep.subr.mxu0 0.0
  %62 = vmatpush1.msra.mxu0 %v38
  %63 = vmatprep.subr.mxu0 0.0
  %64 = vmatpush1.msra.mxu0 %v39
  %65 = vmatprep.subr.mxu0 0.0
  %66 = vmatpush1.msra.mxu0 %v40
  %67 = vmatprep.subr.mxu0 0.0
  %68 = vmatpush1.msra.mxu0 %v41
  %69 = vmatprep.subr.mxu0 0.0
  %70 = vmatpush1.msra.mxu0 %v42
  %71 = vmatprep.subr.mxu0 0.0
  %72 = vmatpush1.msra.mxu0 %v43
  %73 = vmatprep.subr.mxu0 0.0
  %74 = vmatpush1.msra.mxu0 %v44
  %75 = vmatprep.subr.mxu0 0.0
  %76 = vmatpush1.msra.mxu0 %v45
  %77 = vmatprep.subr.mxu0 0.0
  %78 = vmatpush1.msra.mxu0 %v46
  %79 = vmatprep.subr.mxu0 0.0
  %80 = vmatpush1.msra.mxu0 0.0
  %81 = vmatprep.subr.mxu0 0.0
  %82 = vmatpush1.msra.mxu0 0.0
  %83 = vmatprep.subr.mxu0 0.0
  %84 = vmatpush1.msra.mxu0 0.0
  %85 = vmatprep.subr.mxu0 0.0
  %86 = vmatpush1.msra.mxu0 0.0
  %87 = vmatprep.subr.mxu0 0.0
  %88 = vmatpush1.msra.mxu0 0.0
  %89 = vmatprep.subr.mxu0 0.0
  %90 = vmatpush1.msra.mxu0 0.0
  %91 = vmatprep.subr.mxu0 0.0
  %92 = vmatpush1.msra.mxu0 0.0
  %93 = vmatprep.subr.mxu0 0.0
  %94 = vmatpush1.msra.mxu0 0.0
  %95 = vmatprep.subr.mxu0 0.0
  %96 = vmatpush1.msra.mxu0 0.0
  %97 = vmatprep.subr.mxu0 0.0
  %98 = vmatpush1.msra.mxu0 0.0
  %99 = vmatprep.subr.mxu0 0.0
  %100 = vmatpush1.msra.mxu0 0.0
  %101 = vmatprep.subr.mxu0 0.0
  %102 = vmatpush1.msra.mxu0 0.0
  %103 = vmatprep.subr.mxu0 0.0
  %104 = vmatpush1.msra.mxu0 0.0
  %105 = vmatprep.subr.mxu0 0.0
  %106 = vmatpush1.msra.mxu0 0.0
  %107 = vmatprep.subr.mxu0 0.0
  %108 = vmatpush1.msra.mxu0 0.0
  %109 = vmatprep.subr.mxu0 0.0
  %110 = vmatpush1.msra.mxu0 0.0
  %111 = vmatprep.mubr.f32.mxu0 0.0
  %112 = vmatmul.mubr.f32.gmra.mrb[0].mxu0 %v29
  %v113 = vpop.f32.mrb[0].mxu0
  %v114 = vadd.f32 0.0, %v113
  %v115 = vpop.f32.mrb[0].mxu0
  %116 = vmatprep.mubr.f32.mxu0 0.0
  %117 = vmatmul.mubr.f32.gmra.mrb[0].mxu0 %v30
  %v118 = vpop.f32.mrb[0].mxu0
  %v119 = vadd.f32 0.0, %v118
  %v120 = vpop.f32.mrb[0].mxu0
  %121 = vdwg.mxu0
  %v122 = vadd.f32 %v27, %v114
  %v123 = vadd.f32 %v28, %v119
  %124 = vst [vmem:[#allocation2] sm:$0xff] %v122
  %125 = vst [vmem:[#allocation2 + $0x8] sm:$0xff] %v123
  // Predicated region
  $region18: #{linear_pallas.1} parent=0 // pred_check
    %p126 = pneg %p14
  $region19: #{linear_pallas.1} parent=0 // pred_check_branch
    %128 = sbr.rel (%p126) target = $region21
  $region20: #{linear_pallas.1} parent=0 // pred_region
    %v129 = vld [vmem:[#allocation2] sm:$0xff]
    %v130 = vld [vmem:[#allocation2 + $0x8] sm:$0xff]
    %131 = vst [vmem:[%s3] sm:$0xff] %v129
    %132 = vst [vmem:[%s3 + $0x8] sm:$0xff] %v130
  $region21: #{linear_pallas.1} parent=0 // pred_fallthru
    _
  // Predicated region
  $region22: #{linear_pallas.1} parent=0 // pred_check
    _
  $region23: #{linear_pallas.1} parent=0 // pred_check_branch
    %134 = sbr.rel (0) target = $region25
  $region24: #{linear_pallas.1} parent=0 // pred_region
    _
  $region25: #{linear_pallas.1} parent=0 // pred_fallthru
    _
  // Predicated region
  $region26: #{linear_pallas.1} parent=0 // pred_check
    _
  $region27: #{linear_pallas.1} parent=0 // pred_check_branch
    %136 = sbr.rel (0) target = $region29
  $region28: #{linear_pallas.1} parent=0 // pred_region
    _
  $region29: #{linear_pallas.1} parent=0 // pred_fallthru
    _

</llo_original>
